<compile_context>
chip_gen: v7x
topology: tpu7x:2x2x1
jax: 0.10.0
libtpu: 0.0.40
codegen_flags: <defaults>
</compile_context>

<pallas_src>
import functools
import numpy as np
import jax
import jax.numpy as jnp
from jax import lax
from jax.experimental import pallas as pl
from jax.experimental.pallas import tpu as pltpu


def _round_up(x, mult):
    return ((x + mult - 1) // mult) * mult


def _gather_tile_kernel(ids_ref, p_ref, out_ref):
    """Gather out_ref.shape[0] rows of P (resident in VMEM) per grid step.

    ids_ref : SMEM int32[(M_pad,)]  (scalar-prefetched, full id vector)
    p_ref   : VMEM P[(n, d)]        (constant block index -> fetched once)
    out_ref : VMEM out tile[(TM, d)]
    """
    tm = out_ref.shape[0]
    n = p_ref.shape[0]
    base = pl.program_id(0) * tm

    def body(j, carry):
        idx = ids_ref[base + j]
        # Clamp on the (free) scalar unit so a bad id cannot read OOB VMEM.
        idx = jnp.minimum(jnp.maximum(idx, 0), n - 1)
        out_ref[pl.ds(j, 1), :] = p_ref[pl.ds(idx, 1), :]
        return carry

    lax.fori_loop(0, tm, body, 0)


@functools.partial(jax.jit, static_argnames=("tile",))
def edm_forward(P, row_ids, col_ids, *, tile=512):
    """Pallas-backed equivalent of EDMArch.forward(row_ids, col_ids)."""
    n, d = P.shape
    m = row_ids.shape[0]
    M = 2 * m

    # Single gather for both outputs: concatenate the two id vectors.
    ids = jnp.concatenate([row_ids.astype(jnp.int32),
                           col_ids.astype(jnp.int32)])

    # Tile size: multiple of 8 (sublane constraint on the output block),
    # capped by `tile`; pad the id vector up to a whole number of tiles.
    TM = min(tile, _round_up(M, 8))
    M_pad = _round_up(M, TM)
    if M_pad != M:
        ids = jnp.pad(ids, (0, M_pad - M))  # pad with id 0 (a valid row)
    num_tiles = M_pad // TM

    grid_spec = pltpu.PrefetchScalarGridSpec(
        num_scalar_prefetch=1,          # ids -> SMEM, visible to kernel body
        grid=(num_tiles,),
        in_specs=[
            # Whole P resident in VMEM; block shape equals the full array dims
            # (legal even for d=3) and the constant index_map means Pallas
            # does not re-DMA it across grid steps.
            pl.BlockSpec((n, d), lambda i, ids_ref: (0, 0)),
        ],
        out_specs=pl.BlockSpec((TM, d), lambda i, ids_ref: (i, 0)),
    )

    itemsize = jnp.dtype(P.dtype).itemsize
    cost = pl.CostEstimate(
        flops=0,
        transcendentals=0,
        bytes_accessed=int(n * d * itemsize        # P read once
                           + M_pad * d * itemsize  # gathered rows written
                           + M_pad * 4),           # ids
    )

    out = pl.pallas_call(
        _gather_tile_kernel,
        out_shape=jax.ShapeDtypeStruct((M_pad, d), P.dtype),
        grid_spec=grid_spec,
        compiler_params=pltpu.CompilerParams(
            # Shard tiles across the 2 TensorCores on v7x (no-op on v5e/v6e).
            dimension_semantics=("parallel",),
            # Lift v5e's 16 MiB scoped-VMEM default for a resident P; still
            # within v7x's 64 MiB physical VMEM.
            vmem_limit_bytes=64 * 1024 * 1024,
        ),
        cost_estimate=cost,
    )(ids, P)

    return out[:m], out[m:M]


class EDMArchPallas:
    """Mirror of the PyTorch EDMArch module (only state used by forward)."""

    def __init__(self, row_ids, col_ids, C_vals, D_vals, shape, d=3,
                 P=None, P_min=-1.0, P_max=1.0, num_batches=1,
                 precision=32, init_mean_free=True, key=None):
        self.shape = shape
        self.d = d
        self.num_batches = num_batches
        self.row_ids = jnp.asarray(row_ids, dtype=jnp.int32)
        self.col_ids = jnp.asarray(col_ids, dtype=jnp.int32)
        self.D_vals = jnp.asarray(D_vals, dtype=jnp.float32)
        self.C_vals = (jnp.asarray(C_vals, dtype=jnp.float32)
                       if C_vals is not None else None)
        # mask buffer (not used in forward, kept for parity with the module)
        unique_ids = np.unique(np.concatenate([np.asarray(row_ids),
                                               np.asarray(col_ids)]))
        mask = np.zeros(self.n, dtype=bool)
        mask[unique_ids] = 1
        self.mask = jnp.asarray(mask)
        # init_P: P ~ Uniform(P_min, P_max) of shape (n, d)
        if P is None:
            key = jax.random.PRNGKey(0) if key is None else key
            P = jax.random.uniform(key, (self.n, self.d),
                                   dtype=jnp.float32,
                                   minval=P_min, maxval=P_max)
        self.P = P

    @property
    def n(self):
        return int(np.amax(self.shape))

    def __len__(self):
        return len(self.D_vals)

    def forward(self, row_ids, col_ids):
        return edm_forward(self.P,
                           jnp.asarray(row_ids, jnp.int32),
                           jnp.asarray(col_ids, jnp.int32))


if __name__ == "__main__":
    # Small deterministic problem: n = 64 points in d = 3 dims, m = 300 pairs
    # (2m = 600 ids -> padded to 1024 -> a 2-step grid, exercising the tiling).
    n, d, m = 64, 3, 300
    key = jax.random.PRNGKey(0)
    k_p, k_r, k_c = jax.random.split(key, 3)
    row_ids = jax.random.randint(k_r, (m,), 0, n, dtype=jnp.int32)
    col_ids = jax.random.randint(k_c, (m,), 0, n, dtype=jnp.int32)
    D_vals = np.linspace(0.0, 1.0, m, dtype=np.float32)
    C_vals = np.linspace(1.0, 2.0, m, dtype=np.float32)

    model = EDMArchPallas(np.asarray(row_ids), np.asarray(col_ids),
                          C_vals, D_vals,
                          shape=(n, n), d=d,
                          P_min=-1.0, P_max=1.0,
                          key=k_p)

    row_pts, col_pts = model.forward(row_ids, col_ids)
    row_pts = jax.block_until_ready(row_pts)
    col_pts = jax.block_until_ready(col_pts)

    # Verify against plain-JAX gather reference (exact: kernel is a pure copy).
    ref_row = model.P[row_ids, :]
    ref_col = model.P[col_ids, :]
    np.testing.assert_allclose(np.asarray(row_pts), np.asarray(ref_row),
                               rtol=1e-6, atol=1e-6)
    np.testing.assert_allclose(np.asarray(col_pts), np.asarray(ref_col),
                               rtol=1e-6, atol=1e-6)

    print("KERNEL_OK")
</pallas_src>

<mosaic_0001>
module attributes {stable_mosaic.version = 11 : i64} {
  func.func @_gather_tile_kernel(%arg0: i32, %arg1: memref<1024xi32, #tpu.memory_space<smem>>, %arg2: memref<64x3xf32, #tpu.memory_space<vmem>>, %arg3: memref<512x3xf32, #tpu.memory_space<vmem>>) attributes {dimension_semantics = [#tpu.dimension_semantics<parallel>], iteration_bounds = array<i64: 2>, scalar_prefetch = 1 : i64, scratch_operands = 0 : i64, tpu.core_type = #tpu.core_type<tc>, window_params = [{pipeline_mode = #tpu.pipeline_mode<synchronous>, transform_indices = @transform_0, window_bounds = array<i64: 64, 3>}, {transform_indices = @transform_1, window_bounds = array<i64: 512, 3>}]} {
    %c512_i32 = arith.constant 512 : i32
    %0 = arith.muli %arg0, %c512_i32 : i32
    %c0_i32 = arith.constant 0 : i32
    %c512_i32_0 = arith.constant 512 : i32
    %1 = arith.addi %c0_i32, %c512_i32_0 : i32
    %c1_i32 = arith.constant 1 : i32
    scf.for %arg4 = %c0_i32 to %1 step %c1_i32  : i32 {
      %2 = arith.addi %0, %arg4 : i32
      %3 = arith.index_cast %2 : i32 to index
      %4 = memref.load %arg1[%3] : memref<1024xi32, #tpu.memory_space<smem>>
      %c0_i32_2 = arith.constant 0 : i32
      %5 = arith.maxsi %4, %c0_i32_2 : i32
      %c63_i32 = arith.constant 63 : i32
      %6 = arith.minsi %5, %c63_i32 : i32
      %7 = arith.index_cast %6 : i32 to index
      %c0 = arith.constant 0 : index
      %8 = vector.load %arg2[%7, %c0] : memref<64x3xf32, #tpu.memory_space<vmem>>, vector<1x3xf32>
      %9 = arith.index_cast %arg4 : i32 to index
      %c0_3 = arith.constant 0 : index
      %10 = vector.load %arg3[%9, %c0_3] : memref<512x3xf32, #tpu.memory_space<vmem>>, vector<1x3xf32>
      tpu.vector_store %arg3[%9, %c0_3], %8 {strides = array<i32>} : memref<512x3xf32, #tpu.memory_space<vmem>>, vector<1x3xf32>,
    }
    %c512_i32_1 = arith.constant 512 : i32
    return
  }
  func.func @transform_0(%arg0: i32, %arg1: memref<1024xi32, #tpu.memory_space<smem>>) -> (i32, i32) {
    %c0_i32 = arith.constant 0 : i32
    %c0_i32_0 = arith.constant 0 : i32
    %c0_i32_1 = arith.constant 0 : i32
    return %c0_i32, %c0_i32_0 : i32, i32
  }
  func.func @transform_1(%arg0: i32, %arg1: memref<1024xi32, #tpu.memory_space<smem>>) -> (i32, i32) {
    %c0_i32 = arith.constant 0 : i32
    %c0_i32_0 = arith.constant 0 : i32
    return %arg0, %c0_i32 : i32, i32
  }
}

</mosaic_0001>

<llo_original>
// kernel: edm_forward.1
$region0: #{edm_forward.1}
  #allocation0 [shape = 'u32[]', space=smem, size = 0x4, offset = 0x4, fixed_abs, tag = 'smem constant byte address 0x4 - core index']
  #allocation1 [shape = 'u32[144,128]{1,0:T(1,128)}', space=vmem, size = 0x12000, scoped, tag = 'internal scratch']
  #allocation2 [shape = 's32[1]{0}', space=sflag, size = 0x4, scoped, tag = 'scoped memory for edm_forward.1']
  #allocation3 [shape = 'u8[4096]{0}', space=smem, size = 0x1000, scoped, tag = 'prefetched SMEM operand 0']
  %s0 = inlined_call_operand.hbm [shape: s32[1024], index: 0, kind: input, shape index: {}]
  %s1 = inlined_call_operand.hbm [shape: f32[64,3], index: 1, kind: input, shape index: {}]
  %s2 = inlined_call_operand.hbm [shape: f32[1024,3], index: 2, kind: output, shape index: {}]
  %s3 = sld [smem:[#allocation0]]
  $region48: #{edm_forward.1} parent=0
    _
  %s5 = ssub.s32 1, %s3
  %s6 = scalar_select 0, %s5, %s3
  %8 = dma.hbm_to_smem %s0, 128, [#allocation3], [#allocation2]
  %9 = dma.done [#allocation2], 128
  %10 = sfence
  $region1: #{edm_forward.1} parent=0
    #allocation4 [shape = 'u8[32768]{0}', space=vmem, size = 0x8000, scoped, tag = 'input window, operand 1, single buffered']
    #allocation5 [shape = 's32[2]{0}', space=sflag, size = 0x8, scoped, tag = 'scoped memory for edm_forward.1']
    #allocation6 [shape = 's32[2]{0}', space=sflag, size = 0x8, scoped, tag = 'scoped memory for edm_forward.1']
    #allocation7 [shape = 'u8[524288]{0}', space=vmem, size = 0x80000, scoped, tag = 'output window, operand 0']
    %11 = vsyncpa [#allocation5], 0
    %12 = vsyncpa [#allocation6], 0
    %s13 = scalar_lea.sflag [#allocation6], 1
    %14 = vsyncpa %s13, 0
    loop: start=0, step=1, limit=4
    $region2: #{edm_forward.1} parent=1 // loop_pre_header
      _
    $region3: #{edm_forward.1} parent=1 // loop_header
      %s16 = sphi 0, %s20
      %p17 = scmp.ge.s32.totalorder %s16, 4
      %s24 = sphi 0, %s24
      %s26 = sphi 0, %s24
      %s27 = sphi 0, %s26
      %s41 = sphi 0, %s27
      %s47 = sphi 0, %s49
      %s50 = sphi 0, %s47
      %s51 = sphi 0, %s50
      %s67 = sphi 0, %s51
    $region4: #{edm_forward.1} parent=1 // loop_header_branch
      %19 = sbr.rel (%p17) target = $region8
    $region5: #{edm_forward.1} parent=1 // loop_body
      %s21 = ssub.s32 %s16, 1
      %s22 = ssub.s32 %s16, 2
      %s23 = sadd.s32 %s16, 1
      %s25 = sadd.s32 %s24, 1
      %p28 = scmp.eq.s32.totalorder %s16, 1
      %p29 = scmp.ne.s32.totalorder %s24, %s26
      %p30 = scmp.eq.s32.totalorder %s16, 0
      %p31 = por %p29, %p30
      %p32 = scmp.ne.s32.totalorder %s24, %s26
      %p33 = scmp.eq.s32.totalorder %s21, 1
      %p34 = por %p32, %p33
      %p35 = scmp.ne.s32.totalorder %s26, %s27
      %p36 = scmp.eq.s32.totalorder %s21, 0
      %p37 = por %p35, %p36
      %p38 = scmp.ne.s32.totalorder %s26, %s27
      %p39 = scmp.eq.s32.totalorder %s22, 1
      %p40 = por %p38, %p39
      %p42 = scmp.ne.s32.totalorder %s27, %s41
      %p43 = scmp.eq.s32.totalorder %s22, 0
      %p44 = por %p42, %p43
      %s45 = ssub.s32 %s16, %s23
      %p46 = scmp.eq.s32.totalorder %s45, 0
      %s48 = sadd.s32 %s47, 1
      %s49 = scalar_select %p46, %s47, %s48
      %p52 = pneg %p46
      %p53 = scmp.eq.s32.totalorder %s16, 1
      %p54 = por %p52, %p53
      %p55 = scmp.ne.s32.totalorder %s47, %s50
      %p56 = scmp.eq.s32.totalorder %s16, 0
      %p57 = por %p55, %p56
      %p58 = scmp.ne.s32.totalorder %s47, %s50
      %p59 = scmp.eq.s32.totalorder %s21, 1
      %p60 = por %p58, %p59
      %p61 = scmp.ne.s32.totalorder %s50, %s51
      %p62 = scmp.eq.s32.totalorder %s21, 0
      %p63 = por %p61, %p62
      %p64 = scmp.ne.s32.totalorder %s50, %s51
      %p65 = scmp.eq.s32.totalorder %s22, 1
      %p66 = por %p64, %p65
      %p68 = scmp.ne.s32.totalorder %s51, %s67
      %p69 = scmp.eq.s32.totalorder %s22, 0
      %p70 = por %p68, %p69
      %p71 = scmp.le.s32.totalorder 1, %s16
      %p72 = scmp.lt.s32.totalorder %s16, 3
      %p73 = pnand %p71, %p72
      %p74 = pneg %p73
      // Predicated region
      $region9: #{edm_forward.1} parent=5 // pred_check
        _
      $region10: #{edm_forward.1} parent=5 // pred_check_branch
        %76 = sbr.rel (%p73) target = $region12
      $region11: #{edm_forward.1} parent=5 // pred_region
        %s77 = ssub.s32 %s16, 1
        // Predicated region
        $region13: #{edm_forward.1} parent=11 // pred_check
          %p78 = pneg %p37
        $region14: #{edm_forward.1} parent=11 // pred_check_branch
          %80 = sbr.rel (%p78) target = $region16
        $region15: #{edm_forward.1} parent=11 // pred_region
          %s82 = ssub.s32 1024, 1024
          %83 = vsyncadd [#allocation5], %s82
          %s84 = sshll.u32 [#allocation4], 4
          %s85 = int_to_ptr.vmem [resolvable:$true] %s84
          %90 = dma.hbm_to_vmem [thread:$0]  %s1, 1024, %s85, [#allocation5], 128, 128, 8
        $region16: #{edm_forward.1} parent=11 // pred_fallthru
          _
      $region12: #{edm_forward.1} parent=5 // pred_fallthru
        _
      %p91 = scmp.lt.s32.totalorder %s16, 2
      // Predicated region
      $region17: #{edm_forward.1} parent=5 // pred_check
        %p92 = pneg %p91
      $region18: #{edm_forward.1} parent=5 // pred_check_branch
        %94 = sbr.rel (%p92) target = $region20
      $region19: #{edm_forward.1} parent=5 // pred_region
        _
      $region20: #{edm_forward.1} parent=5 // pred_fallthru
        _
      %p95 = scmp.le.s32.totalorder 1, %s16
      %p96 = scmp.lt.s32.totalorder %s16, 3
      %p97 = pnand %p95, %p96
      %p98 = pneg %p97
      // Predicated region
      $region21: #{edm_forward.1} parent=5 // pred_check
        _
      $region22: #{edm_forward.1} parent=5 // pred_check_branch
        %100 = sbr.rel (%p97) target = $region24
      $region23: #{edm_forward.1} parent=5 // pred_region
        %s101 = ssub.s32 %s16, 1
        // Predicated region
        $region25: #{edm_forward.1} parent=23 // pred_check
          %p102 = pneg %p37
        $region26: #{edm_forward.1} parent=23 // pred_check_branch
          %104 = sbr.rel (%p102) target = $region28
        $region27: #{edm_forward.1} parent=23 // pred_region
          %105 = dma.done [#allocation5], 1024
        $region28: #{edm_forward.1} parent=23 // pred_fallthru
          _
        %p106 = pneg %p37
        %p107 = pneg %p34
        %p108 = pneg %p63
        %p109 = pneg %p60
        %s110 = sand.u32 %s50, 1
        %s111 = scalar_lea.sflag [#allocation6], %s110
        %s112 = sand.u32 %s50, 1
        %s113 = smul.addr %s112, 512
        %s114 = scalar_lea.vmem [#allocation7], %s113
        %s115 = smul.u32 64, %s21
        %s116 = smul.u32 %s21, 512
        loop: start=0, step=1, limit=512
        $region29: #{edm_forward.1} parent=23 // loop_pre_header
          _
        $region30: #{edm_forward.1} parent=23 // loop_header
          %s118 = sphi 0, %s122
          %p119 = scmp.ge.s32.totalorder %s118, 512
        $region31: #{edm_forward.1} parent=23 // loop_header_branch
          %121 = sbr.rel (%p119) target = $region35
        $region32: #{edm_forward.1} parent=23 // loop_body
          %s123 = sadd.s32 %s116, %s118
          %s124 = sld [smem:[#allocation3 + %s123]]
          %p125 = scmp.gt.s32.totalorder %s124, 0
          %s126 = scalar_select %p125, %s124, 0
          %p127 = scmp.lt.s32.totalorder %s126, 63
          %s128 = scalar_select %p127, %s126, 63
          %s129 = scalar_lea.vmem [#allocation4], %s128
          %v130 = vld [vmem:[%s129] sm:$0x1]
          %s131 = scalar_lea.vmem %s114, %s118 [#allocation7]
          %vm132 = vcmask 16384
          %133 = vst.msk [vmem:[%s131] sm:$0x1] %vm132, %v130
        $region33: #{edm_forward.1} parent=23 // loop_footer
          %s122 = sadd.s32 1, %s118
        $region34: #{edm_forward.1} parent=23 // loop_footer_branch
          %117 = sbr.rel target = $region30
        $region35: #{edm_forward.1} parent=23 // loop_exit
          _
        %s134 = sand.u32 %s50, 1
        %s135 = scalar_lea.sflag [#allocation6], %s134
        %s136 = sand.u32 %s50, 1
        %s137 = smul.addr %s136, 512
        %s138 = scalar_lea.vmem [#allocation7], %s137
        // Predicated region
        $region36: #{edm_forward.1} parent=23 // pred_check
          %p139 = pneg %p60
        $region37: #{edm_forward.1} parent=23 // pred_check_branch
          %141 = sbr.rel (%p139) target = $region39
        $region38: #{edm_forward.1} parent=23 // pred_region
          %s142 = smul.u32 64, %s21
          %s144 = ssub.s32 8192, 8192
          %145 = vsyncadd %s135, %s144
          %s146 = smul.addr %s142, 128
          %s147 = scalar_lea.hbm %s2, %s146
          %s148 = sshll.u32 %s138, 4
          %s149 = int_to_ptr.vmem [resolvable:$true] %s148
          %154 = dma.vmem_to_hbm [thread:$0]  %s149, 8192, %s147, %s135, 128, 128, 8
        $region39: #{edm_forward.1} parent=23 // pred_fallthru
          _
      $region24: #{edm_forward.1} parent=5 // pred_fallthru
        _
      %p155 = scmp.le.s32.totalorder 2, %s16
      // Predicated region
      $region40: #{edm_forward.1} parent=5 // pred_check
        %p156 = pneg %p155
      $region41: #{edm_forward.1} parent=5 // pred_check_branch
        %158 = sbr.rel (%p156) target = $region43
      $region42: #{edm_forward.1} parent=5 // pred_region
        %s159 = ssub.s32 %s16, 2
        // Predicated region
        $region44: #{edm_forward.1} parent=42 // pred_check
          %p160 = pneg %p66
        $region45: #{edm_forward.1} parent=42 // pred_check_branch
          %162 = sbr.rel (%p160) target = $region47
        $region46: #{edm_forward.1} parent=42 // pred_region
          %s163 = sand.u32 %s51, 1
          %s164 = scalar_lea.sflag [#allocation6], %s163
          %s165 = sand.u32 %s51, 1
          %s166 = smul.addr %s165, 512
          %s167 = scalar_lea.vmem [#allocation7], %s166
          %168 = dma.done %s164, 8192
        $region47: #{edm_forward.1} parent=42 // pred_fallthru
          _
      $region43: #{edm_forward.1} parent=5 // pred_fallthru
        _
    $region6: #{edm_forward.1} parent=1 // loop_footer
      %s20 = sadd.s32 1, %s16
    $region7: #{edm_forward.1} parent=1 // loop_footer_branch
      %15 = sbr.rel target = $region3
    $region8: #{edm_forward.1} parent=1 // loop_exit
      _
    %169 = vsyncpa [#allocation5], 1
    %s170 = scalar_lea.sflag [#allocation5], 1
    %171 = vsyncpa %s170, 1
    %172 = vsyncpa [#allocation6], 1
    %s173 = scalar_lea.sflag [#allocation6], 1
    %174 = vsyncpa %s173, 1

</llo_original>
